<compile_context>
chip_gen: v7x
topology: tpu7x:2x2x1
jax: 0.10.0
libtpu: 0.0.40
codegen_flags: <defaults>
</compile_context>

<pallas_src>
import functools
import numpy as np
import jax
import jax.numpy as jnp
from jax.experimental import pallas as pl
from jax.experimental.pallas import tpu as pltpu


def spiral_row_idx(C, T, kernel_size):
    """NumPy re-implementation of select_spiral's (data-independent) index table."""
    wave_table = [np.zeros(T, dtype=np.int64)]
    for w in range(1, kernel_size + 1):
        if w <= 1:
            wave_table.append(np.zeros(T, dtype=np.int64))
        else:
            forward = list(range(0, w))
            backward = list(range(w - 2, 0, -1))
            base = forward + backward
            reps = T // len(base) + 1
            big = (base * reps)[:T]
            wave_table.append(np.asarray(big, dtype=np.int64))
    wave_table = np.stack(wave_table, axis=0)                # (K+1, T)
    c_range = np.arange(C)
    start_rows = np.clip(c_range - (kernel_size - 1), 0, None)
    window_sizes = c_range - start_rows + 1
    row_idx = start_rows[:, None] + wave_table[window_sizes, :]
    row_idx = np.minimum(row_idx, c_range[:, None])
    return row_idx                                           # (C, T)


def _round_up(n, m):
    return ((n + m - 1) // m) * m


def _largest_divisor_leq(n, cap):
    cap = max(1, min(n, cap))
    for d in range(cap, 0, -1):
        if n % d == 0:
            return d
    return 1


@functools.lru_cache(maxsize=None)
def _spiral_offsets_device(C, T, Tp, Cp, kernel_size):
    """int8 offset table off[t, c] = c - row_idx[c, t] in [0, K-1]; padding = -1.

    Cached (and kept resident on device) per unique geometry so it is built and
    transferred only once per shape, not per call.
    """
    row_idx = spiral_row_idx(C, T, kernel_size)                         # (C, T)
    off_tc = (np.arange(C)[:, None] - row_idx).T.astype(np.int8)        # (T, C)
    off_p = np.full((Tp, Cp), -1, dtype=np.int8)
    off_p[:T, :C] = off_tc
    return jnp.asarray(off_p)


def _spiral_attn_kernel(off_ref, x_ref, wt_ref, b_ref, o_ref, *, K):
    bb, tt, Cp = x_ref.shape
    Cop = o_ref.shape[-1]
    rows = bb * tt

    off = off_ref[...].astype(jnp.int32)             # (tt, Cp), loaded as int8
    x3 = x_ref[...]                                  # (bb, tt, Cp) f32
    x2 = x3.reshape(rows, Cp)

    # Spiral gather: G[b,t,c] = x[b,t, c - off[t,c]] with off in [0, K-1].
    # Padded lanes / padded time rows carry off == -1 and therefore stay zero.
    g = jnp.where((off == 0)[None], x3, 0.0)
    for d in range(1, K):
        # Lane roll brings x[..., c-d] into lane c; wrapped lanes (c < d) can
        # never satisfy off == d, so the select masks them (bit-exact gather).
        x_d = pltpu.roll(x2, shift=d, axis=1).reshape(bb, tt, Cp)
        g = jnp.where((off == d)[None], x_d, g)

    # Pointwise (kernel_size=1) conv == one tall MXU matmul over channels.
    # bf16 inputs, f32 accumulation (full-rate MXU on v5e/v6e/v7x).
    gb = g.reshape(rows, Cp).astype(jnp.bfloat16)
    out = jnp.dot(gb, wt_ref[...], preferred_element_type=jnp.float32)
    out = out + b_ref[...]
    o_ref[...] = out.reshape(bb, tt, Cop).astype(o_ref.dtype)


def spiral_attention(x, conv_weight, conv_bias, kernel_size=3):
    """x: (B, T, C) f32.  conv_weight: (C_out, C_in, 1).  conv_bias: (C_out,)."""
    B, T, C = x.shape
    C_out = conv_weight.shape[0]
    K = kernel_size

    # Lane/sublane padding.  Time is padded up to the row-tile so the MXU M-dim
    # never collapses to a few sublanes; tt stays a multiple of 32 (int8 table).
    TARGET_ROWS = 256
    Cp = _round_up(C, 128)
    Cop = _round_up(C_out, 128)
    tt = min(TARGET_ROWS, _round_up(T, 32))
    Tp = _round_up(T, tt)
    bb = _largest_divisor_leq(B, max(1, TARGET_ROWS // tt))
    grid = (Tp // tt, B // bb)   # batch innermost: off table / weight never re-fetched

    off_p = _spiral_offsets_device(C, T, Tp, Cp, K)

    # TODO(synk): in a real module, pad/transpose the conv params once at init
    # (they are loop-invariant constants) instead of per call.
    wt = jnp.asarray(conv_weight, jnp.float32)[:, :, 0].T.astype(jnp.bfloat16)
    if (Cp, Cop) != (C, C_out):
        wt = jnp.pad(wt, ((0, Cp - C), (0, Cop - C_out)))
    b = jnp.asarray(conv_bias, jnp.float32).reshape(1, C_out)
    if Cop != C_out:
        b = jnp.pad(b, ((0, 0), (0, Cop - C_out)))

    if (Tp, Cp) != (T, C):
        x = jnp.pad(x, ((0, 0), (0, Tp - T), (0, Cp - C)))

    # VMEM budget: x/out/off double-buffered, weight/bias single-buffered,
    # 2x headroom for in-kernel temporaries; capped at v7x physical (64 MiB).
    footprint = (2 * (bb * tt * Cp * 4 + bb * tt * Cop * 4 + tt * Cp * 1)
                 + Cp * Cop * 2 + Cop * 4)
    vmem_limit = int(min(64 * 1024 * 1024, max(2 * footprint + (4 << 20), 16 << 20)))

    kernel = functools.partial(_spiral_attn_kernel, K=K)
    # TODO(synk): for very large channel counts (Cp*Cop bf16 approaching the
    # VMEM budget, C >~ 4096) add a third grid axis tiling the weight's Cop dim.
    out_p = pl.pallas_call(
        kernel,
        out_shape=jax.ShapeDtypeStruct((B, Tp, Cop), x.dtype),
        grid=grid,
        in_specs=[
            pl.BlockSpec((tt, Cp), lambda ti, bi: (ti, 0)),            # off table
            pl.BlockSpec((bb, tt, Cp), lambda ti, bi: (bi, ti, 0)),    # x tile
            pl.BlockSpec((Cp, Cop), lambda ti, bi: (0, 0),
                         pipeline_mode=pl.Buffered(1)),                # weight^T
            pl.BlockSpec((1, Cop), lambda ti, bi: (0, 0),
                         pipeline_mode=pl.Buffered(1)),                # bias
        ],
        out_specs=pl.BlockSpec((bb, tt, Cop), lambda ti, bi: (bi, ti, 0)),
        compiler_params=pltpu.CompilerParams(
            dimension_semantics=("parallel", "parallel"),
            vmem_limit_bytes=vmem_limit),
    )(off_p, x, wt, b)

    return out_p[:, :T, :C_out]


def spiral_attention_ref(x, conv_weight, conv_bias, kernel_size=3):
    """Pure-JAX reference matching the PyTorch forward."""
    B, T, C = x.shape
    row_idx = spiral_row_idx(C, T, kernel_size)              # (C, T)
    idx = jnp.asarray(row_idx.T)                             # (T, C)
    G = jnp.take_along_axis(x, jnp.broadcast_to(idx[None], (B, T, C)), axis=2)
    W = jnp.asarray(conv_weight)[:, :, 0]                    # (C_out, C_in)
    return G @ W.T + jnp.asarray(conv_bias)


if __name__ == "__main__":
    key = jax.random.PRNGKey(0)
    B, T, C = 2, 8, 32                                       # batch, seq, n_embd
    kx, kw, kb = jax.random.split(key, 3)

    x = jax.random.normal(kx, (B, T, C), dtype=jnp.float32)
    # nn.Conv1d(n_embd, n_embd, kernel_size=1) parameters, deterministic init
    bound = 1.0 / np.sqrt(C * 1)
    conv_weight = jax.random.uniform(kw, (C, C, 1), jnp.float32, -bound, bound)
    conv_bias = jax.random.uniform(kb, (C,), jnp.float32, -bound, bound)

    out = spiral_attention(x, conv_weight, conv_bias, kernel_size=3)
    out = jax.block_until_ready(out)

    ref = spiral_attention_ref(x, conv_weight, conv_bias, kernel_size=3)
    # bf16 MXU inputs (f32 accumulation) -> tolerance looser than pure-f32.
    np.testing.assert_allclose(np.asarray(out), np.asarray(ref), rtol=2e-2, atol=2e-2)
    print("KERNEL_OK")
</pallas_src>

<mosaic_0001>
module attributes {stable_mosaic.version = 11 : i64} {
  func.func @_spiral_attn_kernel(%arg0: i32, %arg1: i32, %arg2: memref<32x128xi8, #tpu.memory_space<vmem>>, %arg3: memref<2x32x128xf32, #tpu.memory_space<vmem>>, %arg4: memref<128x128xbf16, #tpu.memory_space<vmem>>, %arg5: memref<1x128xf32, #tpu.memory_space<vmem>>, %arg6: memref<2x32x128xf32, #tpu.memory_space<vmem>>) attributes {dimension_semantics = [#tpu.dimension_semantics<parallel>, #tpu.dimension_semantics<parallel>], iteration_bounds = array<i64: 1, 1>, scalar_prefetch = 0 : i64, scratch_operands = 0 : i64, tpu.core_type = #tpu.core_type<tc>, window_params = [{transform_indices = @transform_0, window_bounds = array<i64: 32, 128>}, {transform_indices = @transform_1, window_bounds = array<i64: 2, 32, 128>}, {pipeline_mode = #tpu.pipeline_mode<synchronous>, transform_indices = @transform_2, window_bounds = array<i64: 128, 128>}, {pipeline_mode = #tpu.pipeline_mode<synchronous>, transform_indices = @transform_3, window_bounds = array<i64: 1, 128>}, {transform_indices = @transform_4, window_bounds = array<i64: 2, 32, 128>}]} {
    %c0 = arith.constant 0 : index
    %c0_0 = arith.constant 0 : index
    %0 = vector.load %arg2[%c0, %c0_0] : memref<32x128xi8, #tpu.memory_space<vmem>>, vector<32x128xi8>
    %1 = arith.extsi %0 : vector<32x128xi8> to vector<32x128xi32>
    %c0_1 = arith.constant 0 : index
    %c0_2 = arith.constant 0 : index
    %c0_3 = arith.constant 0 : index
    %2 = vector.load %arg3[%c0_1, %c0_2, %c0_3] : memref<2x32x128xf32, #tpu.memory_space<vmem>>, vector<2x32x128xf32>
    %3 = vector.shape_cast %2 : vector<2x32x128xf32> to vector<64x128xf32>
    %c0_i32 = arith.constant 0 : i32
    %4 = vector.broadcast %c0_i32 : i32 to vector<32x128xi32>
    %5 = arith.cmpi eq, %1, %4 : vector<32x128xi32>
    %6 = vector.shape_cast %5 : vector<32x128xi1> to vector<1x32x128xi1>
    %cst = arith.constant 0.000000e+00 : f32
    %7 = vector.shape_cast %6 : vector<1x32x128xi1> to vector<1x32x128xi1>
    %8 = vector.broadcast %7 : vector<1x32x128xi1> to vector<2x32x128xi1>
    %9 = vector.broadcast %cst : f32 to vector<2x32x128xf32>
    %10 = arith.select %8, %2, %9 : vector<2x32x128xi1>, vector<2x32x128xf32>
    %c1_i32 = arith.constant 1 : i32
    %11 = tpu.dynamic_rotate %3 by %c1_i32 dim 1 : vector<64x128xf32>, i32 -> vector<64x128xf32>
    %12 = vector.shape_cast %11 : vector<64x128xf32> to vector<2x32x128xf32>
    %c1_i32_4 = arith.constant 1 : i32
    %13 = vector.broadcast %c1_i32_4 : i32 to vector<32x128xi32>
    %14 = arith.cmpi eq, %1, %13 : vector<32x128xi32>
    %15 = vector.shape_cast %14 : vector<32x128xi1> to vector<1x32x128xi1>
    %16 = vector.shape_cast %15 : vector<1x32x128xi1> to vector<1x32x128xi1>
    %17 = vector.broadcast %16 : vector<1x32x128xi1> to vector<2x32x128xi1>
    %18 = arith.select %17, %12, %10 : vector<2x32x128xi1>, vector<2x32x128xf32>
    %c2_i32 = arith.constant 2 : i32
    %19 = tpu.dynamic_rotate %3 by %c2_i32 dim 1 : vector<64x128xf32>, i32 -> vector<64x128xf32>
    %20 = vector.shape_cast %19 : vector<64x128xf32> to vector<2x32x128xf32>
    %c2_i32_5 = arith.constant 2 : i32
    %21 = vector.broadcast %c2_i32_5 : i32 to vector<32x128xi32>
    %22 = arith.cmpi eq, %1, %21 : vector<32x128xi32>
    %23 = vector.shape_cast %22 : vector<32x128xi1> to vector<1x32x128xi1>
    %24 = vector.shape_cast %23 : vector<1x32x128xi1> to vector<1x32x128xi1>
    %25 = vector.broadcast %24 : vector<1x32x128xi1> to vector<2x32x128xi1>
    %26 = arith.select %25, %20, %18 : vector<2x32x128xi1>, vector<2x32x128xf32>
    %27 = vector.shape_cast %26 : vector<2x32x128xf32> to vector<64x128xf32>
    %28 = arith.truncf %27 : vector<64x128xf32> to vector<64x128xbf16>
    %c0_6 = arith.constant 0 : index
    %c0_7 = arith.constant 0 : index
    %29 = vector.load %arg4[%c0_6, %c0_7] : memref<128x128xbf16, #tpu.memory_space<vmem>>, vector<128x128xbf16>
    %cst_8 = arith.constant dense<0.000000e+00> : vector<64x128xf32>
    %30 = tpu.matmul %28, %29, %cst_8 {dimension_numbers = #tpu.dot_dimension_numbers<[1], [0], [0], [1], [0, 0, 1, 1], [], []>} : vector<64x128xbf16>, vector<128x128xbf16>, vector<64x128xf32> -> vector<64x128xf32>
    %c0_9 = arith.constant 0 : index
    %c0_10 = arith.constant 0 : index
    %31 = vector.load %arg5[%c0_9, %c0_10] : memref<1x128xf32, #tpu.memory_space<vmem>>, vector<1x128xf32>
    %32 = vector.broadcast %31 : vector<1x128xf32> to vector<64x128xf32>
    %33 = arith.addf %30, %32 : vector<64x128xf32>
    %34 = vector.shape_cast %33 : vector<64x128xf32> to vector<2x32x128xf32>
    %c0_11 = arith.constant 0 : index
    %c0_12 = arith.constant 0 : index
    %c0_13 = arith.constant 0 : index
    %35 = vector.load %arg6[%c0_11, %c0_12, %c0_13] : memref<2x32x128xf32, #tpu.memory_space<vmem>>, vector<2x32x128xf32>
    tpu.vector_store %arg6[%c0_11, %c0_12, %c0_13], %34 {strides = array<i32>} : memref<2x32x128xf32, #tpu.memory_space<vmem>>, vector<2x32x128xf32>,
    return
  }
  func.func @transform_0(%arg0: i32, %arg1: i32) -> (i32, i32) {
    %c0_i32 = arith.constant 0 : i32
    %c0_i32_0 = arith.constant 0 : i32
    return %arg0, %c0_i32 : i32, i32
  }
  func.func @transform_1(%arg0: i32, %arg1: i32) -> (i32, i32, i32) {
    %c0_i32 = arith.constant 0 : i32
    %c0_i32_0 = arith.constant 0 : i32
    return %arg1, %arg0, %c0_i32 : i32, i32, i32
  }
  func.func @transform_2(%arg0: i32, %arg1: i32) -> (i32, i32) {
    %c0_i32 = arith.constant 0 : i32
    %c0_i32_0 = arith.constant 0 : i32
    %c0_i32_1 = arith.constant 0 : i32
    return %c0_i32, %c0_i32_0 : i32, i32
  }
  func.func @transform_3(%arg0: i32, %arg1: i32) -> (i32, i32) {
    %c0_i32 = arith.constant 0 : i32
    %c0_i32_0 = arith.constant 0 : i32
    %c0_i32_1 = arith.constant 0 : i32
    return %c0_i32, %c0_i32_0 : i32, i32
  }
  func.func @transform_4(%arg0: i32, %arg1: i32) -> (i32, i32, i32) {
    %c0_i32 = arith.constant 0 : i32
    %c0_i32_0 = arith.constant 0 : i32
    return %arg1, %arg0, %c0_i32 : i32, i32, i32
  }
}

</mosaic_0001>

<llo_original>
// kernel: tpu_custom_call.1
$region0: #{tpu_custom_call.1}
  #allocation0 [shape = 'u32[]', space=smem, size = 0x4, offset = 0x4, fixed_abs, tag = 'smem constant byte address 0x4 - core index']
  #allocation1 [shape = 'u32[144,128]{1,0:T(1,128)}', space=vmem, size = 0x12000, scoped, tag = 'internal scratch']
  %s0 = inlined_call_operand.hbm [shape: s8[32,128], index: 0, kind: input, shape index: {}]
  %s1 = inlined_call_operand.hbm [shape: f32[2,32,128], index: 1, kind: input, shape index: {}]
  %s2 = inlined_call_operand.hbm [shape: bf16[128,128], index: 2, kind: input, shape index: {}]
  %s3 = inlined_call_operand.vmem [shape: f32[1,128], index: 3, kind: input, shape index: {}]
  %s4 = inlined_call_operand.hbm [shape: f32[2,32,128], index: 4, kind: output, shape index: {}]
  %s5 = sld [smem:[#allocation0]]
  $region38: #{tpu_custom_call.1} parent=0
    _
  %s7 = ssub.s32 1, %s5
  %s8 = scalar_select 0, %s7, %s5
  $region1: #{tpu_custom_call.1} parent=0
    #allocation2 [shape = 'u8[4096]{0}', space=vmem, size = 0x1000, scoped, tag = 'input window, operand 0, single buffered']
    #allocation3 [shape = 's32[1]{0}', space=sflag, size = 0x4, scoped, tag = 'scoped memory for tpu_custom_call.1']
    #allocation4 [shape = 's32[1]{0}', space=sflag, size = 0x4, scoped, tag = 'scoped memory for tpu_custom_call.1']
    #allocation5 [shape = 'u8[32768]{0}', space=vmem, size = 0x8000, scoped, tag = 'input window, operand 1, single buffered']
    #allocation6 [shape = 's32[1]{0}', space=sflag, size = 0x4, scoped, tag = 'scoped memory for tpu_custom_call.1']
    #allocation7 [shape = 'u8[32768]{0}', space=vmem, size = 0x8000, scoped, tag = 'input window, operand 2, single buffered']
    #allocation8 [shape = 'u8[32768]{0}', space=vmem, size = 0x8000, scoped, tag = 'output window, operand 0, single buffered']
    %9 = vsyncpa [#allocation3], 0
    %10 = vsyncpa [#allocation6], 0
    %11 = vsyncpa [#allocation4], 0
    // Predicated region
    $region2: #{tpu_custom_call.1} parent=1 // pred_check
      _
    $region3: #{tpu_custom_call.1} parent=1 // pred_check_branch
      %13 = sbr.rel (0) target = $region5
    $region4: #{tpu_custom_call.1} parent=1 // pred_region
      %s15 = ssub.s32 128, 128
      %16 = vsyncadd [#allocation3], %s15
      %s18 = sshll.u32 [#allocation2], 4
      %s19 = int_to_ptr.vmem [resolvable:$true] %s18
      %21 = dma.hbm_to_vmem [thread:$0]  %s0, 128, %s19, [#allocation3]
    $region5: #{tpu_custom_call.1} parent=1 // pred_fallthru
      _
    // Predicated region
    $region6: #{tpu_custom_call.1} parent=1 // pred_check
      _
    $region7: #{tpu_custom_call.1} parent=1 // pred_check_branch
      %23 = sbr.rel (0) target = $region9
    $region8: #{tpu_custom_call.1} parent=1 // pred_region
      %s25 = ssub.s32 1024, 1024
      %26 = vsyncadd [#allocation6], %s25
      %s27 = sshll.u32 [#allocation5], 4
      %s28 = int_to_ptr.vmem [resolvable:$true] %s27
      %33 = dma.hbm_to_vmem [thread:$0]  %s1, 1024, %s28, [#allocation6], 128, 128, 8
    $region9: #{tpu_custom_call.1} parent=1 // pred_fallthru
      _
    // Predicated region
    $region10: #{tpu_custom_call.1} parent=1 // pred_check
      _
    $region11: #{tpu_custom_call.1} parent=1 // pred_check_branch
      %35 = sbr.rel (0) target = $region13
    $region12: #{tpu_custom_call.1} parent=1 // pred_region
      %s37 = ssub.s32 1024, 1024
      %38 = vsyncadd [#allocation6], %s37
      %s39 = sshll.u32 [#allocation7], 4
      %s40 = int_to_ptr.vmem [resolvable:$true] %s39
      %45 = dma.hbm_to_vmem [thread:$0]  %s2, 1024, %s40, [#allocation6], 64, 64, 4
    $region13: #{tpu_custom_call.1} parent=1 // pred_fallthru
      _
    // Predicated region
    $region14: #{tpu_custom_call.1} parent=1 // pred_check
      _
    $region15: #{tpu_custom_call.1} parent=1 // pred_check_branch
      %47 = sbr.rel (0) target = $region17
    $region16: #{tpu_custom_call.1} parent=1 // pred_region
      _
    $region17: #{tpu_custom_call.1} parent=1 // pred_fallthru
      _
    // Predicated region
    $region18: #{tpu_custom_call.1} parent=1 // pred_check
      _
    $region19: #{tpu_custom_call.1} parent=1 // pred_check_branch
      %49 = sbr.rel (0) target = $region21
    $region20: #{tpu_custom_call.1} parent=1 // pred_region
      %50 = dma.done [#allocation3], 128
    $region21: #{tpu_custom_call.1} parent=1 // pred_fallthru
      _
    // Predicated region
    $region22: #{tpu_custom_call.1} parent=1 // pred_check
      _
    $region23: #{tpu_custom_call.1} parent=1 // pred_check_branch
      %52 = sbr.rel (0) target = $region25
    $region24: #{tpu_custom_call.1} parent=1 // pred_region
      %53 = dma.done [#allocation6], 1024
    $region25: #{tpu_custom_call.1} parent=1 // pred_fallthru
      _
    // Predicated region
    $region26: #{tpu_custom_call.1} parent=1 // pred_check
      _
    $region27: #{tpu_custom_call.1} parent=1 // pred_check_branch
      %55 = sbr.rel (0) target = $region29
    $region28: #{tpu_custom_call.1} parent=1 // pred_region
      %56 = dma.done [#allocation6], 1024
    $region29: #{tpu_custom_call.1} parent=1 // pred_fallthru
      _
    %v58 = vld [vmem:[#allocation2] sm:$0xff]
    %v59 = vunpack.c.0.s8 %v58
    %v60 = vunpack.c.1.s8 %v58
    %v61 = vunpack.c.2.s8 %v58
    %v62 = vunpack.c.3.s8 %v58
    %v63 = vld [vmem:[#allocation5] sm:$0xff]
    %v64 = vld [vmem:[#allocation5 + $0x8] sm:$0xff]
    %v65 = vld [vmem:[#allocation5 + $0x10] sm:$0xff]
    %v66 = vld [vmem:[#allocation5 + $0x18] sm:$0xff]
    %v67 = vld [vmem:[#allocation5 + $0x20] sm:$0xff]
    %v68 = vld [vmem:[#allocation5 + $0x28] sm:$0xff]
    %v69 = vld [vmem:[#allocation5 + $0x30] sm:$0xff]
    %v70 = vld [vmem:[#allocation5 + $0x38] sm:$0xff]
    %vm71 = vcmp.eq.s32.totalorder %v59, 0
    %vm72 = vcmp.eq.s32.totalorder %v60, 0
    %vm73 = vcmp.eq.s32.totalorder %v61, 0
    %vm74 = vcmp.eq.s32.totalorder %v62, 0
    %v75 = vsel %vm71, 1, 0
    %v76 = vsel %vm72, 1, 0
    %v77 = vsel %vm73, 1, 0
    %v78 = vsel %vm74, 1, 0
    %vm79 = vcmp.eq.s32.totalorder %v75, 1
    %vm80 = vcmp.eq.s32.totalorder %v76, 1
    %vm81 = vcmp.eq.s32.totalorder %v77, 1
    %vm82 = vcmp.eq.s32.totalorder %v78, 1
    %v83 = vsel %vm79, %v63, 0.0
    %v84 = vsel %vm80, %v64, 0.0
    %v85 = vsel %vm81, %v65, 0.0
    %v86 = vsel %vm82, %v66, 0.0
    %v87 = vsel %vm79, %v67, 0.0
    %v88 = vsel %vm80, %v68, 0.0
    %v89 = vsel %vm81, %v69, 0.0
    %v90 = vsel %vm82, %v70, 0.0
    %91 = vrot.lane.b32.xlu0 %v63, 1
    %v92 = vpop.permute.xlu0 %91
    %93 = vrot.lane.b32.xlu0 %v64, 1
    %v94 = vpop.permute.xlu0 %93
    %95 = vrot.lane.b32.xlu0 %v65, 1
    %v96 = vpop.permute.xlu0 %95
    %97 = vrot.lane.b32.xlu0 %v66, 1
    %v98 = vpop.permute.xlu0 %97
    %99 = vrot.lane.b32.xlu0 %v67, 1
    %v100 = vpop.permute.xlu0 %99
    %101 = vrot.lane.b32.xlu0 %v68, 1
    %v102 = vpop.permute.xlu0 %101
    %103 = vrot.lane.b32.xlu0 %v69, 1
    %v104 = vpop.permute.xlu0 %103
    %105 = vrot.lane.b32.xlu0 %v70, 1
    %v106 = vpop.permute.xlu0 %105
    %vm107 = vcmp.eq.s32.totalorder %v59, 1
    %vm108 = vcmp.eq.s32.totalorder %v60, 1
    %vm109 = vcmp.eq.s32.totalorder %v61, 1
    %vm110 = vcmp.eq.s32.totalorder %v62, 1
    %v111 = vsel %vm107, 1, 0
    %v112 = vsel %vm108, 1, 0
    %v113 = vsel %vm109, 1, 0
    %v114 = vsel %vm110, 1, 0
    %vm115 = vcmp.eq.s32.totalorder %v111, 1
    %vm116 = vcmp.eq.s32.totalorder %v112, 1
    %vm117 = vcmp.eq.s32.totalorder %v113, 1
    %vm118 = vcmp.eq.s32.totalorder %v114, 1
    %v119 = vsel %vm115, %v92, %v83
    %v120 = vsel %vm116, %v94, %v84
    %v121 = vsel %vm117, %v96, %v85
    %v122 = vsel %vm118, %v98, %v86
    %v123 = vsel %vm115, %v100, %v87
    %v124 = vsel %vm116, %v102, %v88
    %v125 = vsel %vm117, %v104, %v89
    %v126 = vsel %vm118, %v106, %v90
    %127 = vrot.lane.b32.xlu0 %v63, 2
    %v128 = vpop.permute.xlu0 %127
    %129 = vrot.lane.b32.xlu0 %v64, 2
    %v130 = vpop.permute.xlu0 %129
    %131 = vrot.lane.b32.xlu0 %v65, 2
    %v132 = vpop.permute.xlu0 %131
    %133 = vrot.lane.b32.xlu0 %v66, 2
    %v134 = vpop.permute.xlu0 %133
    %135 = vrot.lane.b32.xlu0 %v67, 2
    %v136 = vpop.permute.xlu0 %135
    %137 = vrot.lane.b32.xlu0 %v68, 2
    %v138 = vpop.permute.xlu0 %137
    %139 = vrot.lane.b32.xlu0 %v69, 2
    %v140 = vpop.permute.xlu0 %139
    %141 = vrot.lane.b32.xlu0 %v70, 2
    %v142 = vpop.permute.xlu0 %141
    %vm143 = vcmp.eq.s32.totalorder %v59, 2
    %vm144 = vcmp.eq.s32.totalorder %v60, 2
    %vm145 = vcmp.eq.s32.totalorder %v61, 2
    %vm146 = vcmp.eq.s32.totalorder %v62, 2
    %v147 = vsel %vm143, 1, 0
    %v148 = vsel %vm144, 1, 0
    %v149 = vsel %vm145, 1, 0
    %v150 = vsel %vm146, 1, 0
    %vm151 = vcmp.eq.s32.totalorder %v147, 1
    %vm152 = vcmp.eq.s32.totalorder %v148, 1
    %vm153 = vcmp.eq.s32.totalorder %v149, 1
    %vm154 = vcmp.eq.s32.totalorder %v150, 1
    %v155 = vsel %vm151, %v128, %v119
    %v156 = vsel %vm152, %v130, %v120
    %v157 = vsel %vm153, %v132, %v121
    %v158 = vsel %vm154, %v134, %v122
    %v159 = vsel %vm151, %v136, %v123
    %v160 = vsel %vm152, %v138, %v124
    %v161 = vsel %vm153, %v140, %v125
    %v162 = vsel %vm154, %v142, %v126
    %v163 = vpack.c.bf16 %v156, %v155
    %v164 = vpack.c.bf16 %v158, %v157
    %v165 = vpack.c.bf16 %v160, %v159
    %v166 = vpack.c.bf16 %v162, %v161
    %v167 = vld [vmem:[#allocation7] sm:$0xf]
    %v168 = vld [vmem:[#allocation7 + $0x4] sm:$0xf]
    %v169 = vld [vmem:[#allocation7 + $0x8] sm:$0xf]
    %v170 = vld [vmem:[#allocation7 + $0xc] sm:$0xf]
    %v171 = vld [vmem:[#allocation7 + $0x10] sm:$0xf]
    %v172 = vld [vmem:[#allocation7 + $0x14] sm:$0xf]
    %v173 = vld [vmem:[#allocation7 + $0x18] sm:$0xf]
    %v174 = vld [vmem:[#allocation7 + $0x1c] sm:$0xf]
    %v175 = vld [vmem:[#allocation7 + $0x20] sm:$0xf]
    %v176 = vld [vmem:[#allocation7 + $0x24] sm:$0xf]
    %v177 = vld [vmem:[#allocation7 + $0x28] sm:$0xf]
    %v178 = vld [vmem:[#allocation7 + $0x2c] sm:$0xf]
    %v179 = vld [vmem:[#allocation7 + $0x30] sm:$0xf]
    %v180 = vld [vmem:[#allocation7 + $0x34] sm:$0xf]
    %v181 = vld [vmem:[#allocation7 + $0x38] sm:$0xf]
    %v182 = vld [vmem:[#allocation7 + $0x3c] sm:$0xf]
    %v183 = vld [vmem:[%s3] sm:$0x1]
    %v185 = vlaneseq
    %v186 = vshrl.u32 %v185, 7
    %v187 = vsub.s32 0, %v186
    %v188 = vrot.slane %v183, %v187
    %v206 = vunpack.c.l.b16 %v167
    %v207 = vunpack.c.l.b16 %v168
    %v208 = vunpack.c.l.b16 %v169
    %v209 = vunpack.c.l.b16 %v170
    %v210 = vunpack.c.l.b16 %v171
    %v211 = vunpack.c.l.b16 %v172
    %v212 = vunpack.c.l.b16 %v173
    %v213 = vunpack.c.l.b16 %v174
    %v214 = vunpack.c.l.b16 %v175
    %v215 = vunpack.c.l.b16 %v176
    %v216 = vunpack.c.l.b16 %v177
    %v217 = vunpack.c.l.b16 %v178
    %v218 = vunpack.c.l.b16 %v179
    %v219 = vunpack.c.l.b16 %v180
    %v220 = vunpack.c.l.b16 %v181
    %v221 = vunpack.c.l.b16 %v182
    %v222 = vpack.c.b16 %v207, %v206
    %v223 = vpack.c.b16 %v209, %v208
    %v224 = vpack.c.b16 %v211, %v210
    %v225 = vpack.c.b16 %v213, %v212
    %v226 = vpack.c.b16 %v215, %v214
    %v227 = vpack.c.b16 %v217, %v216
    %v228 = vpack.c.b16 %v219, %v218
    %v229 = vpack.c.b16 %v221, %v220
    %238 = vmatprep.subr.bf16.mxu0 0
    %239 = vmatpush1.bf16.msra.mxu0 %v222
    %240 = vmatprep.subr.bf16.mxu0 0
    %241 = vmatpush1.bf16.msra.mxu0 %v223
    %242 = vmatprep.subr.bf16.mxu0 0
    %243 = vmatpush1.bf16.msra.mxu0 %v224
    %244 = vmatprep.subr.bf16.mxu0 0
    %245 = vmatpush1.bf16.msra.mxu0 %v225
    %246 = vmatprep.subr.bf16.mxu0 0
    %247 = vmatpush1.bf16.msra.mxu0 %v226
    %248 = vmatprep.subr.bf16.mxu0 0
    %249 = vmatpush1.bf16.msra.mxu0 %v227
    %250 = vmatprep.subr.bf16.mxu0 0
    %251 = vmatpush1.bf16.msra.mxu0 %v228
    %252 = vmatprep.subr.bf16.mxu0 0
    %253 = vmatpush1.bf16.msra.mxu0 %v229
    %254 = vmatprep.subr.bf16.mxu0 0
    %255 = vmatpush1.bf16.msra.mxu0 0
    %256 = vmatprep.subr.bf16.mxu0 0
    %257 = vmatpush1.bf16.msra.mxu0 0
    %258 = vmatprep.subr.bf16.mxu0 0
    %259 = vmatpush1.bf16.msra.mxu0 0
    %260 = vmatprep.subr.bf16.mxu0 0
    %261 = vmatpush1.bf16.msra.mxu0 0
    %262 = vmatprep.subr.bf16.mxu0 0
    %263 = vmatpush1.bf16.msra.mxu0 0
    %264 = vmatprep.subr.bf16.mxu0 0
    %265 = vmatpush1.bf16.msra.mxu0 0
    %266 = vmatprep.subr.bf16.mxu0 0
    %267 = vmatpush1.bf16.msra.mxu0 0
    %268 = vmatprep.subr.bf16.mxu0 0
    %269 = vmatpush1.bf16.msra.mxu0 0
    %270 = vmatprep.mubr.bf16.mxu0 0
    %271 = vmatmul.mubr.bf16.gmra.mrb[0].mxu0 %v163
    %v272 = vpop.f32.mrb[0].mxu0
    %v273 = vadd.f32 %v188, %v272
    %v274 = vpop.f32.mrb[0].mxu0
    %v275 = vpop.f32.mrb[0].mxu0
    %v276 = vadd.f32 %v188, %v275
    %v277 = vpop.f32.mrb[0].mxu0
    %278 = vmatprep.mubr.bf16.mxu0 0
    %279 = vmatmul.mubr.bf16.gmra.mrb[0].mxu0 %v164
    %v280 = vpop.f32.mrb[0].mxu0
    %v281 = vadd.f32 %v188, %v280
    %v282 = vpop.f32.mrb[0].mxu0
    %v283 = vpop.f32.mrb[0].mxu0
    %v284 = vadd.f32 %v188, %v283
    %v285 = vpop.f32.mrb[0].mxu0
    %286 = vmatprep.mubr.bf16.mxu0 0
    %287 = vmatmul.mubr.bf16.gmra.mrb[0].mxu0 %v165
    %v288 = vpop.f32.mrb[0].mxu0
    %v289 = vadd.f32 %v188, %v288
    %v290 = vpop.f32.mrb[0].mxu0
    %v291 = vpop.f32.mrb[0].mxu0
    %v292 = vadd.f32 %v188, %v291
    %v293 = vpop.f32.mrb[0].mxu0
    %294 = vmatprep.mubr.bf16.mxu0 0
    %295 = vmatmul.mubr.bf16.gmra.mrb[0].mxu0 %v166
    %v296 = vpop.f32.mrb[0].mxu0
    %v297 = vadd.f32 %v188, %v296
    %v298 = vpop.f32.mrb[0].mxu0
    %v299 = vpop.f32.mrb[0].mxu0
    %v300 = vadd.f32 %v188, %v299
    %v301 = vpop.f32.mrb[0].mxu0
    %302 = vdwg.mxu0
    %303 = vst [vmem:[#allocation8] sm:$0xff] %v273
    %304 = vst [vmem:[#allocation8 + $0x8] sm:$0xff] %v276
    %305 = vst [vmem:[#allocation8 + $0x10] sm:$0xff] %v281
    %306 = vst [vmem:[#allocation8 + $0x18] sm:$0xff] %v284
    %307 = vst [vmem:[#allocation8 + $0x20] sm:$0xff] %v289
    %308 = vst [vmem:[#allocation8 + $0x28] sm:$0xff] %v292
    %309 = vst [vmem:[#allocation8 + $0x30] sm:$0xff] %v297
    %310 = vst [vmem:[#allocation8 + $0x38] sm:$0xff] %v300
    // Predicated region
    $region30: #{tpu_custom_call.1} parent=1 // pred_check
      _
    $region31: #{tpu_custom_call.1} parent=1 // pred_check_branch
      %312 = sbr.rel (0) target = $region33
    $region32: #{tpu_custom_call.1} parent=1 // pred_region
      %s314 = ssub.s32 1024, 1024
      %315 = vsyncadd [#allocation4], %s314
      %s316 = sshll.u32 [#allocation8], 4
      %s317 = int_to_ptr.vmem [resolvable:$true] %s316
      %322 = dma.vmem_to_hbm [thread:$0]  %s317, 1024, %s4, [#allocation4], 128, 128, 8
    $region33: #{tpu_custom_call.1} parent=1 // pred_fallthru
      _
    // Predicated region
    $region34: #{tpu_custom_call.1} parent=1 // pred_check
      _
    $region35: #{tpu_custom_call.1} parent=1 // pred_check_branch
      %324 = sbr.rel (0) target = $region37
    $region36: #{tpu_custom_call.1} parent=1 // pred_region
      %325 = dma.done [#allocation4], 1024
    $region37: #{tpu_custom_call.1} parent=1 // pred_fallthru
      _
    %326 = vsyncpa [#allocation3], 1
    %327 = vsyncpa [#allocation6], 1
    %328 = vsyncpa [#allocation4], 1

</llo_original>
